<compile_context>
chip_gen: v5e
topology: v5e:2x2
jax: 0.10.0
libtpu: 0.0.40
codegen_flags: <defaults>
</compile_context>

<pallas_src>
import functools

import jax
import jax.numpy as jnp
from jax.experimental import pallas as pl
from jax.experimental.pallas import tpu as pltpu


def _round_up(x: int, m: int) -> int:
    return ((x + m - 1) // m) * m


def _vmem_capacity_bytes() -> int:
    """Per-core VMEM capacity; conservative fallback (v7x, 64 MiB)."""
    try:
        return int(pltpu.get_tpu_info().vmem_capacity_bytes)
    except Exception:  # query unavailable -> assume the smallest generation
        return 64 << 20


def _make_kernel(*, C, P, gw, gw_pad, rows, K_pad, E_pad, compute_dtype):
    def kernel(x_ref, w_ref, b_ref, o_ref, pm_ref):
        # x_ref : (C, rows, P, gw, P)  input-dtype NCHW tile (minor dims full)
        # w_ref : (K_pad, E_pad)       bf16, resident across the whole grid
        # b_ref : (1, E_pad)           f32,  resident
        # o_ref : (1, rows, gw, E_pad)
        # pm_ref: (rows, gw_pad, K_pad) bf16 staging buffer (patch matrix)

        # Zero the staging buffer (covers the K-pad lanes and gw-pad rows);
        # this is a pure VMEM store, ~free next to the HBM/MXU work.
        pm_ref[...] = jnp.zeros_like(pm_ref)

        # Fused patchify: for every (channel, in-patch row) copy a natural
        # (rows, gw, P) slab into its K columns.  Only plain integer/slice
        # indexing - no transposes, no lane-splitting reshapes.
        for c in range(C):
            for ph in range(P):
                col = (c * P + ph) * P
                pm_ref[:, :gw, col:col + P] = (
                    x_ref[c, :, ph, :, :].astype(compute_dtype))

        # One lane-dense MXU GEMM per tile, f32 accumulation.
        # (rows, gw_pad, K_pad) -> (rows*gw_pad, K_pad) is a free re-tiling
        # because gw_pad is a multiple of the bf16 sublane tile.
        pm = pm_ref[...].reshape(rows * gw_pad, K_pad)
        acc = jnp.dot(pm, w_ref[...], preferred_element_type=jnp.float32)
        acc = acc + b_ref[...]
        acc = acc.reshape(rows, gw_pad, E_pad)[:, :gw, :]   # drop gw padding
        o_ref[0] = acc.astype(o_ref.dtype)

    return kernel


@functools.partial(jax.jit, static_argnames=("patch_size", "out_dtype"))
def patch_embed(x, weight, bias, patch_size, out_dtype=jnp.bfloat16):
    """
    x:      (N, C, H, W)       float32 (NCHW, like the PyTorch module)
    weight: (E, C, P, P)       float32 (nn.Conv2d weight layout)
    bias:   (E,)               float32
    returns (N, n_patches, E)  out_dtype (bf16 by default, f32 accumulation)
    """
    N, C, H, W = x.shape
    E = weight.shape[0]
    P = int(patch_size)
    gh, gw = H // P, W // P
    assert gh > 0 and gw > 0, "image smaller than one patch"
    n_patches = gh * gw
    K = C * P * P

    compute_dtype = jnp.bfloat16
    out_dtype = jnp.dtype(out_dtype)
    cd_itemsize = jnp.dtype(compute_dtype).itemsize
    out_itemsize = out_dtype.itemsize
    x_itemsize = jnp.dtype(x.dtype).itemsize

    # Conv2d(kernel=stride=P, padding=0): drop incomplete trailing patches.
    if H != gh * P or W != gw * P:
        x = x[:, :, :gh * P, :gw * P]

    # Free, order-preserving view: (N, C, H, W) -> (N*C, gh, P, gw, P).
    x5 = x.reshape(N * C, gh, P, gw, P)

    # GEMM operand padding: lane-dense K and E, sublane-tile-aligned gw.
    E_pad = _round_up(E, 128)
    K_pad = _round_up(K, 128)
    gw_pad = _round_up(gw, (8 * 4) // cd_itemsize)          # 16 for bf16

    w2 = weight.reshape(E, K).T.astype(compute_dtype)       # (K, E), (c,ph,pw)-major
    w2 = jnp.pad(w2, ((0, K_pad - K), (0, E_pad - E)))
    b2 = jnp.pad(bias.astype(jnp.float32).reshape(1, E), ((0, 0), (0, E_pad - E)))

    # ---- generation-aware tile-height selection --------------------------
    cap = _vmem_capacity_bytes()
    budget = int(cap * 0.6)                                  # headroom for compiler scratch

    def _footprint(rows):
        # Padded VMEM bytes, counting the pipeline's double buffering of the
        # streamed x/out blocks and (conservatively) of the resident weight.
        x_blk = (C * rows * P) * _round_up(gw, 8) * _round_up(P, 128) * x_itemsize
        o_blk = rows * _round_up(gw, (8 * 4) // out_itemsize) * E_pad * out_itemsize
        stage = rows * gw_pad * K_pad * cd_itemsize
        w_res = K_pad * E_pad * cd_itemsize
        b_res = 8 * E_pad * 4
        return 2 * x_blk + 2 * o_blk + stage + 2 * (w_res + b_res)

    divisors = [d for d in range(1, gh + 1) if gh % d == 0]
    fitting = [d for d in divisors if _footprint(d) <= budget]
    rows = max(fitting) if fitting else 1
    if N == 1 and gh // rows < 2:
        # keep >= 2 grid steps so v7x's two TensorCores both get work
        halved = [d for d in fitting if gh // d >= 2]
        if halved:
            rows = max(halved)

    vmem_limit = int(min(cap * 0.85, max(32 << 20, _footprint(rows) + (8 << 20))))

    grid = (N, gh // rows)

    kernel = _make_kernel(C=C, P=P, gw=gw, gw_pad=gw_pad, rows=rows,
                          K_pad=K_pad, E_pad=E_pad, compute_dtype=compute_dtype)

    cost = pl.CostEstimate(
        flops=2 * N * n_patches * K * E,
        transcendentals=0,
        bytes_accessed=(N * C * gh * gw * P * P * x_itemsize
                        + K_pad * E_pad * cd_itemsize + E_pad * 4
                        + N * n_patches * E_pad * out_itemsize),
    )

    out = pl.pallas_call(
        kernel,
        out_shape=jax.ShapeDtypeStruct((N, gh, gw, E_pad), out_dtype),
        grid=grid,
        in_specs=[
            # streamed NCHW tile: one image's channels x `rows` patch rows
            pl.BlockSpec((C, rows, P, gw, P), lambda n, h: (n, h, 0, 0, 0)),
            # weight / bias: constant block index -> fetched once, resident
            pl.BlockSpec((K_pad, E_pad), lambda n, h: (0, 0)),
            pl.BlockSpec((1, E_pad), lambda n, h: (0, 0)),
        ],
        out_specs=pl.BlockSpec((1, rows, gw, E_pad), lambda n, h: (n, h, 0, 0)),
        scratch_shapes=[pltpu.VMEM((rows, gw_pad, K_pad), compute_dtype)],
        compiler_params=pltpu.CompilerParams(
            dimension_semantics=("parallel", "parallel"),
            vmem_limit_bytes=vmem_limit),
        cost_estimate=cost,
    )(x5, w2, b2)

    if E_pad != E:                       # only when E is not 128-aligned
        out = out[..., :E]
    return out.reshape(N, n_patches, E)


if __name__ == "__main__":
    # Small, deterministic config consistent with the module.
    img_size = 16
    patch_size = 4
    in_chans = 4
    embed_dim = 32
    batch = 2

    key = jax.random.PRNGKey(0)
    kx, kw, kb = jax.random.split(key, 3)

    x = jax.random.normal(kx, (batch, in_chans, img_size, img_size), jnp.float32)
    weight = jax.random.normal(
        kw, (embed_dim, in_chans, patch_size, patch_size), jnp.float32) * 0.02
    bias = jax.random.normal(kb, (embed_dim,), jnp.float32) * 0.02

    out = patch_embed(x, weight, bias, patch_size)
    out = jax.block_until_ready(out)

    # Reference with matching bf16-input / f32-accumulate math
    # (strided Conv2d == patch extraction + linear projection).
    ref = jax.lax.conv_general_dilated(
        x.astype(jnp.bfloat16), weight.astype(jnp.bfloat16),
        window_strides=(patch_size, patch_size), padding="VALID",
        dimension_numbers=("NCHW", "OIHW", "NCHW"),
        preferred_element_type=jnp.float32)
    ref = ref + bias[None, :, None, None]
    Nr, Er, gh, gw = ref.shape
    ref = ref.reshape(Nr, Er, gh * gw).transpose(0, 2, 1)    # flatten(2).transpose(1,2)

    n_patches = (img_size // patch_size) ** 2
    assert out.shape == (batch, n_patches, embed_dim), out.shape
    assert out.dtype == jnp.bfloat16
    err = float(jnp.max(jnp.abs(out.astype(jnp.float32) - ref)))
    assert err < 2e-2, err

    print("KERNEL_OK")
</pallas_src>

<mosaic_0001>
module attributes {stable_mosaic.version = 11 : i64} {
  func.func @kernel(%arg0: i32, %arg1: i32, %arg2: memref<4x4x4x4x4xf32, #tpu.memory_space<vmem>>, %arg3: memref<128x128xbf16, #tpu.memory_space<vmem>>, %arg4: memref<1x128xf32, #tpu.memory_space<vmem>>, %arg5: memref<1x4x4x128xbf16, #tpu.memory_space<vmem>>, %arg6: memref<4x16x128xbf16, #tpu.memory_space<vmem>>) attributes {dimension_semantics = [#tpu.dimension_semantics<parallel>, #tpu.dimension_semantics<parallel>], iteration_bounds = array<i64: 2, 1>, scalar_prefetch = 0 : i64, scratch_operands = 1 : i64, tpu.core_type = #tpu.core_type<tc>, window_params = [{transform_indices = @transform_0, window_bounds = array<i64: 4, 4, 4, 4, 4>}, {pipeline_mode = #tpu.pipeline_mode<synchronous>, transform_indices = @transform_1, window_bounds = array<i64: 128, 128>}, {pipeline_mode = #tpu.pipeline_mode<synchronous>, transform_indices = @transform_2, window_bounds = array<i64: 1, 128>}, {transform_indices = @transform_3, window_bounds = array<i64: 1, 4, 4, 128>}]} {
    %cst = arith.constant 0.000000e+00 : bf16
    %0 = vector.broadcast %cst : bf16 to vector<4x16x128xbf16>
    %c0 = arith.constant 0 : index
    %c0_0 = arith.constant 0 : index
    %c0_1 = arith.constant 0 : index
    %1 = vector.load %arg6[%c0, %c0_0, %c0_1] : memref<4x16x128xbf16, #tpu.memory_space<vmem>>, vector<4x16x128xbf16>
    tpu.vector_store %arg6[%c0, %c0_0, %c0_1], %0 {strides = array<i32>} : memref<4x16x128xbf16, #tpu.memory_space<vmem>>, vector<4x16x128xbf16>,
    %c0_2 = arith.constant 0 : index
    %c0_3 = arith.constant 0 : index
    %c0_4 = arith.constant 0 : index
    %c0_5 = arith.constant 0 : index
    %c0_6 = arith.constant 0 : index
    %2 = vector.load %arg2[%c0_2, %c0_3, %c0_4, %c0_5, %c0_6] : memref<4x4x4x4x4xf32, #tpu.memory_space<vmem>>, vector<1x4x1x4x4xf32>
    %3 = vector.shape_cast %2 : vector<1x4x1x4x4xf32> to vector<4x4x4xf32>
    %4 = arith.truncf %3 : vector<4x4x4xf32> to vector<4x4x4xbf16>
    %c0_7 = arith.constant 0 : index
    %c0_8 = arith.constant 0 : index
    %c0_9 = arith.constant 0 : index
    %5 = vector.load %arg6[%c0_7, %c0_8, %c0_9] : memref<4x16x128xbf16, #tpu.memory_space<vmem>>, vector<4x4x4xbf16>
    tpu.vector_store %arg6[%c0_7, %c0_8, %c0_9], %4 {strides = array<i32>} : memref<4x16x128xbf16, #tpu.memory_space<vmem>>, vector<4x4x4xbf16>,
    %c0_10 = arith.constant 0 : index
    %c0_11 = arith.constant 0 : index
    %c1 = arith.constant 1 : index
    %c0_12 = arith.constant 0 : index
    %c0_13 = arith.constant 0 : index
    %6 = vector.load %arg2[%c0_10, %c0_11, %c1, %c0_12, %c0_13] : memref<4x4x4x4x4xf32, #tpu.memory_space<vmem>>, vector<1x4x1x4x4xf32>
    %7 = vector.shape_cast %6 : vector<1x4x1x4x4xf32> to vector<4x4x4xf32>
    %8 = arith.truncf %7 : vector<4x4x4xf32> to vector<4x4x4xbf16>
    %c0_14 = arith.constant 0 : index
    %c0_15 = arith.constant 0 : index
    %c4 = arith.constant 4 : index
    %9 = vector.load %arg6[%c0_14, %c0_15, %c4] : memref<4x16x128xbf16, #tpu.memory_space<vmem>>, vector<4x4x4xbf16>
    tpu.vector_store %arg6[%c0_14, %c0_15, %c4], %8 {strides = array<i32>} : memref<4x16x128xbf16, #tpu.memory_space<vmem>>, vector<4x4x4xbf16>,
    %c0_16 = arith.constant 0 : index
    %c0_17 = arith.constant 0 : index
    %c2 = arith.constant 2 : index
    %c0_18 = arith.constant 0 : index
    %c0_19 = arith.constant 0 : index
    %10 = vector.load %arg2[%c0_16, %c0_17, %c2, %c0_18, %c0_19] : memref<4x4x4x4x4xf32, #tpu.memory_space<vmem>>, vector<1x4x1x4x4xf32>
    %11 = vector.shape_cast %10 : vector<1x4x1x4x4xf32> to vector<4x4x4xf32>
    %12 = arith.truncf %11 : vector<4x4x4xf32> to vector<4x4x4xbf16>
    %c0_20 = arith.constant 0 : index
    %c0_21 = arith.constant 0 : index
    %c8 = arith.constant 8 : index
    %13 = vector.load %arg6[%c0_20, %c0_21, %c8] : memref<4x16x128xbf16, #tpu.memory_space<vmem>>, vector<4x4x4xbf16>
    tpu.vector_store %arg6[%c0_20, %c0_21, %c8], %12 {strides = array<i32>} : memref<4x16x128xbf16, #tpu.memory_space<vmem>>, vector<4x4x4xbf16>,
    %c0_22 = arith.constant 0 : index
    %c0_23 = arith.constant 0 : index
    %c3 = arith.constant 3 : index
    %c0_24 = arith.constant 0 : index
    %c0_25 = arith.constant 0 : index
    %14 = vector.load %arg2[%c0_22, %c0_23, %c3, %c0_24, %c0_25] : memref<4x4x4x4x4xf32, #tpu.memory_space<vmem>>, vector<1x4x1x4x4xf32>
    %15 = vector.shape_cast %14 : vector<1x4x1x4x4xf32> to vector<4x4x4xf32>
    %16 = arith.truncf %15 : vector<4x4x4xf32> to vector<4x4x4xbf16>
    %c0_26 = arith.constant 0 : index
    %c0_27 = arith.constant 0 : index
    %c12 = arith.constant 12 : index
    %17 = vector.load %arg6[%c0_26, %c0_27, %c12] : memref<4x16x128xbf16, #tpu.memory_space<vmem>>, vector<4x4x4xbf16>
    tpu.vector_store %arg6[%c0_26, %c0_27, %c12], %16 {strides = array<i32>} : memref<4x16x128xbf16, #tpu.memory_space<vmem>>, vector<4x4x4xbf16>,
    %c1_28 = arith.constant 1 : index
    %c0_29 = arith.constant 0 : index
    %c0_30 = arith.constant 0 : index
    %c0_31 = arith.constant 0 : index
    %c0_32 = arith.constant 0 : index
    %18 = vector.load %arg2[%c1_28, %c0_29, %c0_30, %c0_31, %c0_32] : memref<4x4x4x4x4xf32, #tpu.memory_space<vmem>>, vector<1x4x1x4x4xf32>
    %19 = vector.shape_cast %18 : vector<1x4x1x4x4xf32> to vector<4x4x4xf32>
    %20 = arith.truncf %19 : vector<4x4x4xf32> to vector<4x4x4xbf16>
    %c0_33 = arith.constant 0 : index
    %c0_34 = arith.constant 0 : index
    %c16 = arith.constant 16 : index
    %21 = vector.load %arg6[%c0_33, %c0_34, %c16] : memref<4x16x128xbf16, #tpu.memory_space<vmem>>, vector<4x4x4xbf16>
    tpu.vector_store %arg6[%c0_33, %c0_34, %c16], %20 {strides = array<i32>} : memref<4x16x128xbf16, #tpu.memory_space<vmem>>, vector<4x4x4xbf16>,
    %c1_35 = arith.constant 1 : index
    %c0_36 = arith.constant 0 : index
    %c1_37 = arith.constant 1 : index
    %c0_38 = arith.constant 0 : index
    %c0_39 = arith.constant 0 : index
    %22 = vector.load %arg2[%c1_35, %c0_36, %c1_37, %c0_38, %c0_39] : memref<4x4x4x4x4xf32, #tpu.memory_space<vmem>>, vector<1x4x1x4x4xf32>
    %23 = vector.shape_cast %22 : vector<1x4x1x4x4xf32> to vector<4x4x4xf32>
    %24 = arith.truncf %23 : vector<4x4x4xf32> to vector<4x4x4xbf16>
    %c0_40 = arith.constant 0 : index
    %c0_41 = arith.constant 0 : index
    %c20 = arith.constant 20 : index
    %25 = vector.load %arg6[%c0_40, %c0_41, %c20] : memref<4x16x128xbf16, #tpu.memory_space<vmem>>, vector<4x4x4xbf16>
    tpu.vector_store %arg6[%c0_40, %c0_41, %c20], %24 {strides = array<i32>} : memref<4x16x128xbf16, #tpu.memory_space<vmem>>, vector<4x4x4xbf16>,
    %c1_42 = arith.constant 1 : index
    %c0_43 = arith.constant 0 : index
    %c2_44 = arith.constant 2 : index
    %c0_45 = arith.constant 0 : index
    %c0_46 = arith.constant 0 : index
    %26 = vector.load %arg2[%c1_42, %c0_43, %c2_44, %c0_45, %c0_46] : memref<4x4x4x4x4xf32, #tpu.memory_space<vmem>>, vector<1x4x1x4x4xf32>
    %27 = vector.shape_cast %26 : vector<1x4x1x4x4xf32> to vector<4x4x4xf32>
    %28 = arith.truncf %27 : vector<4x4x4xf32> to vector<4x4x4xbf16>
    %c0_47 = arith.constant 0 : index
    %c0_48 = arith.constant 0 : index
    %c24 = arith.constant 24 : index
    %29 = vector.load %arg6[%c0_47, %c0_48, %c24] : memref<4x16x128xbf16, #tpu.memory_space<vmem>>, vector<4x4x4xbf16>
    tpu.vector_store %arg6[%c0_47, %c0_48, %c24], %28 {strides = array<i32>} : memref<4x16x128xbf16, #tpu.memory_space<vmem>>, vector<4x4x4xbf16>,
    %c1_49 = arith.constant 1 : index
    %c0_50 = arith.constant 0 : index
    %c3_51 = arith.constant 3 : index
    %c0_52 = arith.constant 0 : index
    %c0_53 = arith.constant 0 : index
    %30 = vector.load %arg2[%c1_49, %c0_50, %c3_51, %c0_52, %c0_53] : memref<4x4x4x4x4xf32, #tpu.memory_space<vmem>>, vector<1x4x1x4x4xf32>
    %31 = vector.shape_cast %30 : vector<1x4x1x4x4xf32> to vector<4x4x4xf32>
    %32 = arith.truncf %31 : vector<4x4x4xf32> to vector<4x4x4xbf16>
    %c0_54 = arith.constant 0 : index
    %c0_55 = arith.constant 0 : index
    %c28 = arith.constant 28 : index
    %33 = vector.load %arg6[%c0_54, %c0_55, %c28] : memref<4x16x128xbf16, #tpu.memory_space<vmem>>, vector<4x4x4xbf16>
    tpu.vector_store %arg6[%c0_54, %c0_55, %c28], %32 {strides = array<i32>} : memref<4x16x128xbf16, #tpu.memory_space<vmem>>, vector<4x4x4xbf16>,
    %c2_56 = arith.constant 2 : index
    %c0_57 = arith.constant 0 : index
    %c0_58 = arith.constant 0 : index
    %c0_59 = arith.constant 0 : index
    %c0_60 = arith.constant 0 : index
    %34 = vector.load %arg2[%c2_56, %c0_57, %c0_58, %c0_59, %c0_60] : memref<4x4x4x4x4xf32, #tpu.memory_space<vmem>>, vector<1x4x1x4x4xf32>
    %35 = vector.shape_cast %34 : vector<1x4x1x4x4xf32> to vector<4x4x4xf32>
    %36 = arith.truncf %35 : vector<4x4x4xf32> to vector<4x4x4xbf16>
    %c0_61 = arith.constant 0 : index
    %c0_62 = arith.constant 0 : index
    %c32 = arith.constant 32 : index
    %37 = vector.load %arg6[%c0_61, %c0_62, %c32] : memref<4x16x128xbf16, #tpu.memory_space<vmem>>, vector<4x4x4xbf16>
    tpu.vector_store %arg6[%c0_61, %c0_62, %c32], %36 {strides = array<i32>} : memref<4x16x128xbf16, #tpu.memory_space<vmem>>, vector<4x4x4xbf16>,
    %c2_63 = arith.constant 2 : index
    %c0_64 = arith.constant 0 : index
    %c1_65 = arith.constant 1 : index
    %c0_66 = arith.constant 0 : index
    %c0_67 = arith.constant 0 : index
    %38 = vector.load %arg2[%c2_63, %c0_64, %c1_65, %c0_66, %c0_67] : memref<4x4x4x4x4xf32, #tpu.memory_space<vmem>>, vector<1x4x1x4x4xf32>
    %39 = vector.shape_cast %38 : vector<1x4x1x4x4xf32> to vector<4x4x4xf32>
    %40 = arith.truncf %39 : vector<4x4x4xf32> to vector<4x4x4xbf16>
    %c0_68 = arith.constant 0 : index
    %c0_69 = arith.constant 0 : index
    %c36 = arith.constant 36 : index
    %41 = vector.load %arg6[%c0_68, %c0_69, %c36] : memref<4x16x128xbf16, #tpu.memory_space<vmem>>, vector<4x4x4xbf16>
    tpu.vector_store %arg6[%c0_68, %c0_69, %c36], %40 {strides = array<i32>} : memref<4x16x128xbf16, #tpu.memory_space<vmem>>, vector<4x4x4xbf16>,
    %c2_70 = arith.constant 2 : index
    %c0_71 = arith.constant 0 : index
    %c2_72 = arith.constant 2 : index
    %c0_73 = arith.constant 0 : index
    %c0_74 = arith.constant 0 : index
    %42 = vector.load %arg2[%c2_70, %c0_71, %c2_72, %c0_73, %c0_74] : memref<4x4x4x4x4xf32, #tpu.memory_space<vmem>>, vector<1x4x1x4x4xf32>
    %43 = vector.shape_cast %42 : vector<1x4x1x4x4xf32> to vector<4x4x4xf32>
    %44 = arith.truncf %43 : vector<4x4x4xf32> to vector<4x4x4xbf16>
    %c0_75 = arith.constant 0 : index
    %c0_76 = arith.constant 0 : index
    %c40 = arith.constant 40 : index
    %45 = vector.load %arg6[%c0_75, %c0_76, %c40] : memref<4x16x128xbf16, #tpu.memory_space<vmem>>, vector<4x4x4xbf16>
    tpu.vector_store %arg6[%c0_75, %c0_76, %c40], %44 {strides = array<i32>} : memref<4x16x128xbf16, #tpu.memory_space<vmem>>, vector<4x4x4xbf16>,
    %c2_77 = arith.constant 2 : index
    %c0_78 = arith.constant 0 : index
    %c3_79 = arith.constant 3 : index
    %c0_80 = arith.constant 0 : index
    %c0_81 = arith.constant 0 : index
    %46 = vector.load %arg2[%c2_77, %c0_78, %c3_79, %c0_80, %c0_81] : memref<4x4x4x4x4xf32, #tpu.memory_space<vmem>>, vector<1x4x1x4x4xf32>
    %47 = vector.shape_cast %46 : vector<1x4x1x4x4xf32> to vector<4x4x4xf32>
    %48 = arith.truncf %47 : vector<4x4x4xf32> to vector<4x4x4xbf16>
    %c0_82 = arith.constant 0 : index
    %c0_83 = arith.constant 0 : index
    %c44 = arith.constant 44 : index
    %49 = vector.load %arg6[%c0_82, %c0_83, %c44] : memref<4x16x128xbf16, #tpu.memory_space<vmem>>, vector<4x4x4xbf16>
    tpu.vector_store %arg6[%c0_82, %c0_83, %c44], %48 {strides = array<i32>} : memref<4x16x128xbf16, #tpu.memory_space<vmem>>, vector<4x4x4xbf16>,
    %c3_84 = arith.constant 3 : index
    %c0_85 = arith.constant 0 : index
    %c0_86 = arith.constant 0 : index
    %c0_87 = arith.constant 0 : index
    %c0_88 = arith.constant 0 : index
    %50 = vector.load %arg2[%c3_84, %c0_85, %c0_86, %c0_87, %c0_88] : memref<4x4x4x4x4xf32, #tpu.memory_space<vmem>>, vector<1x4x1x4x4xf32>
    %51 = vector.shape_cast %50 : vector<1x4x1x4x4xf32> to vector<4x4x4xf32>
    %52 = arith.truncf %51 : vector<4x4x4xf32> to vector<4x4x4xbf16>
    %c0_89 = arith.constant 0 : index
    %c0_90 = arith.constant 0 : index
    %c48 = arith.constant 48 : index
    %53 = vector.load %arg6[%c0_89, %c0_90, %c48] : memref<4x16x128xbf16, #tpu.memory_space<vmem>>, vector<4x4x4xbf16>
    tpu.vector_store %arg6[%c0_89, %c0_90, %c48], %52 {strides = array<i32>} : memref<4x16x128xbf16, #tpu.memory_space<vmem>>, vector<4x4x4xbf16>,
    %c3_91 = arith.constant 3 : index
    %c0_92 = arith.constant 0 : index
    %c1_93 = arith.constant 1 : index
    %c0_94 = arith.constant 0 : index
    %c0_95 = arith.constant 0 : index
    %54 = vector.load %arg2[%c3_91, %c0_92, %c1_93, %c0_94, %c0_95] : memref<4x4x4x4x4xf32, #tpu.memory_space<vmem>>, vector<1x4x1x4x4xf32>
    %55 = vector.shape_cast %54 : vector<1x4x1x4x4xf32> to vector<4x4x4xf32>
    %56 = arith.truncf %55 : vector<4x4x4xf32> to vector<4x4x4xbf16>
    %c0_96 = arith.constant 0 : index
    %c0_97 = arith.constant 0 : index
    %c52 = arith.constant 52 : index
    %57 = vector.load %arg6[%c0_96, %c0_97, %c52] : memref<4x16x128xbf16, #tpu.memory_space<vmem>>, vector<4x4x4xbf16>
    tpu.vector_store %arg6[%c0_96, %c0_97, %c52], %56 {strides = array<i32>} : memref<4x16x128xbf16, #tpu.memory_space<vmem>>, vector<4x4x4xbf16>,
    %c3_98 = arith.constant 3 : index
    %c0_99 = arith.constant 0 : index
    %c2_100 = arith.constant 2 : index
    %c0_101 = arith.constant 0 : index
    %c0_102 = arith.constant 0 : index
    %58 = vector.load %arg2[%c3_98, %c0_99, %c2_100, %c0_101, %c0_102] : memref<4x4x4x4x4xf32, #tpu.memory_space<vmem>>, vector<1x4x1x4x4xf32>
    %59 = vector.shape_cast %58 : vector<1x4x1x4x4xf32> to vector<4x4x4xf32>
    %60 = arith.truncf %59 : vector<4x4x4xf32> to vector<4x4x4xbf16>
    %c0_103 = arith.constant 0 : index
    %c0_104 = arith.constant 0 : index
    %c56 = arith.constant 56 : index
    %61 = vector.load %arg6[%c0_103, %c0_104, %c56] : memref<4x16x128xbf16, #tpu.memory_space<vmem>>, vector<4x4x4xbf16>
    tpu.vector_store %arg6[%c0_103, %c0_104, %c56], %60 {strides = array<i32>} : memref<4x16x128xbf16, #tpu.memory_space<vmem>>, vector<4x4x4xbf16>,
    %c3_105 = arith.constant 3 : index
    %c0_106 = arith.constant 0 : index
    %c3_107 = arith.constant 3 : index
    %c0_108 = arith.constant 0 : index
    %c0_109 = arith.constant 0 : index
    %62 = vector.load %arg2[%c3_105, %c0_106, %c3_107, %c0_108, %c0_109] : memref<4x4x4x4x4xf32, #tpu.memory_space<vmem>>, vector<1x4x1x4x4xf32>
    %63 = vector.shape_cast %62 : vector<1x4x1x4x4xf32> to vector<4x4x4xf32>
    %64 = arith.truncf %63 : vector<4x4x4xf32> to vector<4x4x4xbf16>
    %c0_110 = arith.constant 0 : index
    %c0_111 = arith.constant 0 : index
    %c60 = arith.constant 60 : index
    %65 = vector.load %arg6[%c0_110, %c0_111, %c60] : memref<4x16x128xbf16, #tpu.memory_space<vmem>>, vector<4x4x4xbf16>
    tpu.vector_store %arg6[%c0_110, %c0_111, %c60], %64 {strides = array<i32>} : memref<4x16x128xbf16, #tpu.memory_space<vmem>>, vector<4x4x4xbf16>,
    %c0_112 = arith.constant 0 : index
    %c0_113 = arith.constant 0 : index
    %c0_114 = arith.constant 0 : index
    %66 = vector.load %arg6[%c0_112, %c0_113, %c0_114] : memref<4x16x128xbf16, #tpu.memory_space<vmem>>, vector<4x16x128xbf16>
    %67 = vector.shape_cast %66 : vector<4x16x128xbf16> to vector<64x128xbf16>
    %c0_115 = arith.constant 0 : index
    %c0_116 = arith.constant 0 : index
    %68 = vector.load %arg3[%c0_115, %c0_116] : memref<128x128xbf16, #tpu.memory_space<vmem>>, vector<128x128xbf16>
    %cst_117 = arith.constant dense<0.000000e+00> : vector<64x128xf32>
    %69 = tpu.matmul %67, %68, %cst_117 {dimension_numbers = #tpu.dot_dimension_numbers<[1], [0], [0], [1], [0, 0, 1, 1], [], []>} : vector<64x128xbf16>, vector<128x128xbf16>, vector<64x128xf32> -> vector<64x128xf32>
    %c0_118 = arith.constant 0 : index
    %c0_119 = arith.constant 0 : index
    %70 = vector.load %arg4[%c0_118, %c0_119] : memref<1x128xf32, #tpu.memory_space<vmem>>, vector<1x128xf32>
    %71 = vector.broadcast %70 : vector<1x128xf32> to vector<64x128xf32>
    %72 = arith.addf %69, %71 : vector<64x128xf32>
    %73 = vector.shape_cast %72 : vector<64x128xf32> to vector<4x16x128xf32>
    %74 = vector.extract_strided_slice %73 {offsets = [0, 0, 0], sizes = [4, 4, 128], strides = [1, 1, 1]} : vector<4x16x128xf32> to vector<4x4x128xf32>
    %75 = arith.truncf %74 : vector<4x4x128xf32> to vector<4x4x128xbf16>
    %c0_120 = arith.constant 0 : index
    %c0_121 = arith.constant 0 : index
    %c0_122 = arith.constant 0 : index
    %c0_123 = arith.constant 0 : index
    %76 = vector.load %arg5[%c0_120, %c0_121, %c0_122, %c0_123] : memref<1x4x4x128xbf16, #tpu.memory_space<vmem>>, vector<1x4x4x128xbf16>
    %77 = vector.shape_cast %76 : vector<1x4x4x128xbf16> to vector<4x4x128xbf16>
    %78 = vector.shape_cast %75 : vector<4x4x128xbf16> to vector<1x4x4x128xbf16>
    tpu.vector_store %arg5[%c0_120, %c0_121, %c0_122, %c0_123], %78 {strides = array<i32>} : memref<1x4x4x128xbf16, #tpu.memory_space<vmem>>, vector<1x4x4x128xbf16>,
    return
  }
  func.func @transform_0(%arg0: i32, %arg1: i32) -> (i32, i32, i32, i32, i32) {
    %c0_i32 = arith.constant 0 : i32
    %c0_i32_0 = arith.constant 0 : i32
    %c0_i32_1 = arith.constant 0 : i32
    %c0_i32_2 = arith.constant 0 : i32
    return %arg0, %arg1, %c0_i32, %c0_i32_0, %c0_i32_1 : i32, i32, i32, i32, i32
  }
  func.func @transform_1(%arg0: i32, %arg1: i32) -> (i32, i32) {
    %c0_i32 = arith.constant 0 : i32
    %c0_i32_0 = arith.constant 0 : i32
    %c0_i32_1 = arith.constant 0 : i32
    return %c0_i32, %c0_i32_0 : i32, i32
  }
  func.func @transform_2(%arg0: i32, %arg1: i32) -> (i32, i32) {
    %c0_i32 = arith.constant 0 : i32
    %c0_i32_0 = arith.constant 0 : i32
    %c0_i32_1 = arith.constant 0 : i32
    return %c0_i32, %c0_i32_0 : i32, i32
  }
  func.func @transform_3(%arg0: i32, %arg1: i32) -> (i32, i32, i32, i32) {
    %c0_i32 = arith.constant 0 : i32
    %c0_i32_0 = arith.constant 0 : i32
    %c0_i32_1 = arith.constant 0 : i32
    return %arg0, %arg1, %c0_i32, %c0_i32_0 : i32, i32, i32, i32
  }
}

</mosaic_0001>

<llo_original>
// kernel: patch_embed.1
$region0: #{patch_embed.1}
  #allocation0 [shape = 'u32[]', space=smem, size = 0x4, offset = 0x4, fixed_abs, tag = 'smem constant byte address 0x4 - core index']
  #allocation1 [shape = 'u32[72,128]{1,0:T(1,128)}', space=vmem, size = 0x9000, scoped, tag = 'internal scratch']
  #allocation2 [shape = 'bf16[4,16,128]{2,1,0:T(8,128)(2,1)}', space=vmem, size = 0x4000, scoped, tag = 'scratch operand']
  %s0 = inlined_call_operand.vmem [shape: f32[8,4,4,4,4], index: 0, kind: input, shape index: {}]
  %s1 = inlined_call_operand.vmem [shape: bf16[128,128], index: 1, kind: input, shape index: {}]
  %s2 = inlined_call_operand.vmem [shape: f32[1,128], index: 2, kind: input, shape index: {}]
  %s3 = inlined_call_operand.hbm [shape: bf16[2,4,4,128], index: 3, kind: output, shape index: {}]
  %s4 = sld [smem:[#allocation0]]
  $region45: #{patch_embed.1} parent=0
    _
  %s6 = ssub.s32 1, %s4
  %s7 = scalar_select 0, %s6, %s4
  $region1: #{patch_embed.1} parent=0
    #allocation3 [shape = 'u8[8192]{0}', space=vmem, size = 0x2000, scoped, tag = 'output window, operand 0']
    #allocation4 [shape = 's32[2]{0}', space=sflag, size = 0x8, scoped, tag = 'scoped memory for patch_embed.1']
    %8 = vsyncpa [#allocation4], 0
    %s9 = scalar_lea.sflag [#allocation4], 1
    %10 = vsyncpa %s9, 0
    loop: start=0, step=1, limit=4
    $region2: #{patch_embed.1} parent=1 // loop_pre_header
      _
    $region3: #{patch_embed.1} parent=1 // loop_header
      %s12 = sphi 0, %s16
      %p13 = scmp.ge.s32.totalorder %s12, 4
      %s19 = sphi 0, %s31
      %s20 = sphi 0, %s27
      %s21 = sphi 0, %s19
      %s22 = sphi 0, %s20
      %s23 = sphi 0, %s21
      %s24 = sphi 0, %s22
      %s36 = sphi 0, %s38
      %s39 = sphi 0, %s36
      %s40 = sphi 0, %s39
      %s56 = sphi 0, %s40
      %s60 = sphi 0, %s60
      %s62 = sphi 0, %s60
      %s63 = sphi 0, %s62
      %s77 = sphi 0, %s63
      %s81 = sphi 0, %s81
      %s83 = sphi 0, %s81
      %s84 = sphi 0, %s83
      %s98 = sphi 0, %s84
      %s106 = sphi 0, %s108
      %s109 = sphi 0, %s106
      %s110 = sphi 0, %s109
      %s126 = sphi 0, %s110
    $region4: #{patch_embed.1} parent=1 // loop_header_branch
      %15 = sbr.rel (%p13) target = $region8
    $region5: #{patch_embed.1} parent=1 // loop_body
      %s17 = ssub.s32 %s12, 1
      %s18 = ssub.s32 %s12, 2
      %s25 = sadd.s32 1, %s20
      %p26 = scmp.ge.s32.totalorder %s25, 1
      %s27 = scalar_select %p26, 0, %s25
      %s28 = sadd.s32 1, %s19
      %s29 = scalar_select %p26, %s28, %s19
      %p30 = scmp.ge.s32.totalorder %s29, 2
      %s31 = scalar_select %p30, 0, %s29
      %s32 = ssub.s32 %s19, %s31
      %s33 = ssub.s32 %s20, %s27
      %s34 = sor.u32 %s32, %s33
      %p35 = scmp.eq.s32.totalorder %s34, 0
      %s37 = sadd.s32 %s36, 1
      %s38 = scalar_select %p35, %s36, %s37
      %p41 = pneg %p35
      %p42 = scmp.eq.s32.totalorder %s12, 1
      %p43 = por %p41, %p42
      %p44 = scmp.ne.s32.totalorder %s36, %s39
      %p45 = scmp.eq.s32.totalorder %s12, 0
      %p46 = por %p44, %p45
      %p47 = scmp.ne.s32.totalorder %s36, %s39
      %p48 = scmp.eq.s32.totalorder %s17, 1
      %p49 = por %p47, %p48
      %p50 = scmp.ne.s32.totalorder %s39, %s40
      %p51 = scmp.eq.s32.totalorder %s17, 0
      %p52 = por %p50, %p51
      %p53 = scmp.ne.s32.totalorder %s39, %s40
      %p54 = scmp.eq.s32.totalorder %s18, 1
      %p55 = por %p53, %p54
      %p57 = scmp.ne.s32.totalorder %s40, %s56
      %p58 = scmp.eq.s32.totalorder %s18, 0
      %p59 = por %p57, %p58
      %s61 = sadd.s32 %s60, 1
      %p64 = scmp.eq.s32.totalorder %s12, 1
      %p65 = scmp.ne.s32.totalorder %s60, %s62
      %p66 = scmp.eq.s32.totalorder %s12, 0
      %p67 = por %p65, %p66
      %p68 = scmp.ne.s32.totalorder %s60, %s62
      %p69 = scmp.eq.s32.totalorder %s17, 1
      %p70 = por %p68, %p69
      %p71 = scmp.ne.s32.totalorder %s62, %s63
      %p72 = scmp.eq.s32.totalorder %s17, 0
      %p73 = por %p71, %p72
      %p74 = scmp.ne.s32.totalorder %s62, %s63
      %p75 = scmp.eq.s32.totalorder %s18, 1
      %p76 = por %p74, %p75
      %p78 = scmp.ne.s32.totalorder %s63, %s77
      %p79 = scmp.eq.s32.totalorder %s18, 0
      %p80 = por %p78, %p79
      %s82 = sadd.s32 %s81, 1
      %p85 = scmp.eq.s32.totalorder %s12, 1
      %p86 = scmp.ne.s32.totalorder %s81, %s83
      %p87 = scmp.eq.s32.totalorder %s12, 0
      %p88 = por %p86, %p87
      %p89 = scmp.ne.s32.totalorder %s81, %s83
      %p90 = scmp.eq.s32.totalorder %s17, 1
      %p91 = por %p89, %p90
      %p92 = scmp.ne.s32.totalorder %s83, %s84
      %p93 = scmp.eq.s32.totalorder %s17, 0
      %p94 = por %p92, %p93
      %p95 = scmp.ne.s32.totalorder %s83, %s84
      %p96 = scmp.eq.s32.totalorder %s18, 1
      %p97 = por %p95, %p96
      %p99 = scmp.ne.s32.totalorder %s84, %s98
      %p100 = scmp.eq.s32.totalorder %s18, 0
      %p101 = por %p99, %p100
      %s102 = ssub.s32 %s19, %s31
      %s103 = ssub.s32 %s20, %s27
      %s104 = sor.u32 %s102, %s103
      %p105 = scmp.eq.s32.totalorder %s104, 0
      %s107 = sadd.s32 %s106, 1
      %s108 = scalar_select %p105, %s106, %s107
      %p111 = pneg %p105
      %p112 = scmp.eq.s32.totalorder %s12, 1
      %p113 = por %p111, %p112
      %p114 = scmp.ne.s32.totalorder %s106, %s109
      %p115 = scmp.eq.s32.totalorder %s12, 0
      %p116 = por %p114, %p115
      %p117 = scmp.ne.s32.totalorder %s106, %s109
      %p118 = scmp.eq.s32.totalorder %s17, 1
      %p119 = por %p117, %p118
      %p120 = scmp.ne.s32.totalorder %s109, %s110
      %p121 = scmp.eq.s32.totalorder %s17, 0
      %p122 = por %p120, %p121
      %p123 = scmp.ne.s32.totalorder %s109, %s110
      %p124 = scmp.eq.s32.totalorder %s18, 1
      %p125 = por %p123, %p124
      %p127 = scmp.ne.s32.totalorder %s110, %s126
      %p128 = scmp.eq.s32.totalorder %s18, 0
      %p129 = por %p127, %p128
      %p130 = scmp.le.s32.totalorder 1, %s12
      %p131 = scmp.lt.s32.totalorder %s12, 3
      %p132 = pnand %p130, %p131
      %p133 = pneg %p132
      // Predicated region
      $region9: #{patch_embed.1} parent=5 // pred_check
        _
      $region10: #{patch_embed.1} parent=5 // pred_check_branch
        %135 = sbr.rel (%p132) target = $region12
      $region11: #{patch_embed.1} parent=5 // pred_region
        %s136 = ssub.s32 %s12, 1
        // Predicated region
        $region13: #{patch_embed.1} parent=11 // pred_check
          %p137 = pneg %p73
        $region14: #{patch_embed.1} parent=11 // pred_check_branch
          %139 = sbr.rel (%p137) target = $region16
        $region15: #{patch_embed.1} parent=11 // pred_region
          _
        $region16: #{patch_embed.1} parent=11 // pred_fallthru
          _
        // Predicated region
        $region17: #{patch_embed.1} parent=11 // pred_check
          %p140 = pneg %p94
        $region18: #{patch_embed.1} parent=11 // pred_check_branch
          %142 = sbr.rel (%p140) target = $region20
        $region19: #{patch_embed.1} parent=11 // pred_region
          _
        $region20: #{patch_embed.1} parent=11 // pred_fallthru
          _
      $region12: #{patch_embed.1} parent=5 // pred_fallthru
        _
      %p143 = scmp.lt.s32.totalorder %s12, 2
      // Predicated region
      $region21: #{patch_embed.1} parent=5 // pred_check
        %p144 = pneg %p143
      $region22: #{patch_embed.1} parent=5 // pred_check_branch
        %146 = sbr.rel (%p144) target = $region24
      $region23: #{patch_embed.1} parent=5 // pred_region
        // Predicated region
        $region25: #{patch_embed.1} parent=23 // pred_check
          %p147 = pneg %p46
        $region26: #{patch_embed.1} parent=23 // pred_check_branch
          %149 = sbr.rel (%p147) target = $region28
        $region27: #{patch_embed.1} parent=23 // pred_region
          %s150 = smul.u32 4, %s19
          %s151 = smul.u32 4, %s20
          %p152 = scmp.lt.s32.totalorder %s150, 7
          %s153 = scalar_select %p152, %s150, 7
          %p154 = scmp.lt.s32.totalorder %s151, 3
          %s155 = scalar_select %p154, %s151, 3
          %s156 = smul.addr %s155, 4
          %s157 = smul.addr %s153, 16
          %s158 = sadd.s32 %s156, %s157
          %s159 = smul.addr %s158, 4
          %s160 = scalar_lea.vmem %s0, %s159
          %s161 = smul.u32 4, %s19
          %s162 = smul.u32 4, %s20
        $region28: #{patch_embed.1} parent=23 // pred_fallthru
          _
      $region24: #{patch_embed.1} parent=5 // pred_fallthru
        _
      %p163 = scmp.le.s32.totalorder 1, %s12
      %p164 = scmp.lt.s32.totalorder %s12, 3
      %p165 = pnand %p163, %p164
      %p166 = pneg %p165
      // Predicated region
      $region29: #{patch_embed.1} parent=5 // pred_check
        _
      $region30: #{patch_embed.1} parent=5 // pred_check_branch
        %168 = sbr.rel (%p165) target = $region32
      $region31: #{patch_embed.1} parent=5 // pred_region
        %s169 = ssub.s32 %s12, 1
        %s170 = smul.u32 4, %s21
        %s171 = smul.u32 4, %s22
        %p172 = scmp.lt.s32.totalorder %s170, 7
        %s173 = scalar_select %p172, %s170, 7
        %p174 = scmp.lt.s32.totalorder %s171, 3
        %s175 = scalar_select %p174, %s171, 3
        %s176 = smul.addr %s175, 4
        %s177 = smul.addr %s173, 16
        %s178 = sadd.s32 %s176, %s177
        %s179 = smul.addr %s178, 4
        %s180 = scalar_lea.vmem %s0, %s179
        %p181 = pneg %p52
        %p182 = pneg %p49
        %p183 = pneg %p73
        %p184 = pneg %p70
        %p185 = pneg %p94
        %p186 = pneg %p91
        %p187 = pneg %p122
        %p188 = pneg %p119
        %s189 = sand.u32 %s109, 1
        %s190 = scalar_lea.sflag [#allocation4], %s189
        %s191 = sand.u32 %s109, 1
        %s192 = smul.addr %s191, 8
        %s193 = scalar_lea.vmem [#allocation3], %s192
        %s194 = smul.u32 4, %s21
        %s195 = smul.u32 4, %s22
        %p196 = scmp.lt.s32.totalorder %s194, 7
        %s197 = scalar_select %p196, %s194, 7
        %p198 = scmp.lt.s32.totalorder %s195, 3
        %s199 = scalar_select %p198, %s195, 3
        %s200 = smul.addr %s199, 4
        %s201 = smul.addr %s197, 16
        %s202 = sadd.s32 %s200, %s201
        %s203 = smul.addr %s202, 4
        %s204 = scalar_lea.vmem %s0, %s203
        %s205 = smul.u32 4, %s21
        %s206 = smul.u32 4, %s22
        %s207 = smul.u32 4, %s22
        %209 = vst [vmem:[#allocation2] sm:$0xf] 0
        %210 = vst [vmem:[#allocation2 + $0x4] sm:$0xf] 0
        %211 = vst [vmem:[#allocation2 + $0x8] sm:$0xf] 0
        %212 = vst [vmem:[#allocation2 + $0xc] sm:$0xf] 0
        %213 = vst [vmem:[#allocation2 + $0x10] sm:$0xf] 0
        %214 = vst [vmem:[#allocation2 + $0x14] sm:$0xf] 0
        %215 = vst [vmem:[#allocation2 + $0x18] sm:$0xf] 0
        %216 = vst [vmem:[#allocation2 + $0x1c] sm:$0xf] 0
        %v217 = vld [vmem:[%s204] sm:$0xf]
        %v218 = vld [vmem:[%s204 + $0x10] sm:$0xf]
        %v219 = vld [vmem:[%s204 + $0x20] sm:$0xf]
        %v220 = vld [vmem:[%s204 + $0x30] sm:$0xf]
        %v221 = vpack.c.bf16 %v217, %v217
        %v222 = vpack.c.bf16 %v218, %v218
        %v223 = vpack.c.bf16 %v219, %v219
        %v224 = vpack.c.bf16 %v220, %v220
        %vm225 = vcmask 25600
        %226 = vst.msk [vmem:[#allocation2] sm:$0x3] %vm225, %v221
        %227 = vst.msk [vmem:[#allocation2 + $0x8] sm:$0x3] %vm225, %v222
        %228 = vst.msk [vmem:[#allocation2 + $0x10] sm:$0x3] %vm225, %v223
        %229 = vst.msk [vmem:[#allocation2 + $0x18] sm:$0x3] %vm225, %v224
        %s230 = scalar_lea.vmem %s204, 4
        %v231 = vld [vmem:[%s230] sm:$0xf]
        %v232 = vld [vmem:[%s230 + $0x10] sm:$0xf]
        %v233 = vld [vmem:[%s230 + $0x20] sm:$0xf]
        %v234 = vld [vmem:[%s230 + $0x30] sm:$0xf]
        %v235 = vpack.c.bf16 %v231, %v231
        %v236 = vpack.c.bf16 %v232, %v232
        %v237 = vpack.c.bf16 %v233, %v233
        %v238 = vpack.c.bf16 %v234, %v234
        %243 = vrot.lane.b32.xlu0 %v235, 4
        %v244 = vpop.permute.xlu0 %243
        %245 = vrot.lane.b32.xlu0 %v236, 4
        %v246 = vpop.permute.xlu0 %245
        %247 = vrot.lane.b32.xlu0 %v237, 4
        %v248 = vpop.permute.xlu0 %247
        %249 = vrot.lane.b32.xlu0 %v238, 4
        %v250 = vpop.permute.xlu0 %249
        %vm255 = vcmask 58400
        %256 = vst.msk [vmem:[#allocation2] sm:$0x3] %vm255, %v244
        %257 = vst.msk [vmem:[#allocation2 + $0x8] sm:$0x3] %vm255, %v246
        %258 = vst.msk [vmem:[#allocation2 + $0x10] sm:$0x3] %vm255, %v248
        %259 = vst.msk [vmem:[#allocation2 + $0x18] sm:$0x3] %vm255, %v250
        %s260 = scalar_lea.vmem %s204, 8
        %v261 = vld [vmem:[%s260] sm:$0xf]
        %v262 = vld [vmem:[%s260 + $0x10] sm:$0xf]
        %v263 = vld [vmem:[%s260 + $0x20] sm:$0xf]
        %v264 = vld [vmem:[%s260 + $0x30] sm:$0xf]
        %v265 = vpack.c.bf16 %v261, %v261
        %v266 = vpack.c.bf16 %v262, %v262
        %v267 = vpack.c.bf16 %v263, %v263
        %v268 = vpack.c.bf16 %v264, %v264
        %273 = vrot.lane.b32.xlu0 %v265, 8
        %v274 = vpop.permute.xlu0 %273
        %275 = vrot.lane.b32.xlu0 %v266, 8
        %v276 = vpop.permute.xlu0 %275
        %277 = vrot.lane.b32.xlu0 %v267, 8
        %v278 = vpop.permute.xlu0 %277
        %279 = vrot.lane.b32.xlu0 %v268, 8
        %v280 = vpop.permute.xlu0 %279
        %vm285 = vcmask 91200
        %286 = vst.msk [vmem:[#allocation2] sm:$0x3] %vm285, %v274
        %287 = vst.msk [vmem:[#allocation2 + $0x8] sm:$0x3] %vm285, %v276
        %288 = vst.msk [vmem:[#allocation2 + $0x10] sm:$0x3] %vm285, %v278
        %289 = vst.msk [vmem:[#allocation2 + $0x18] sm:$0x3] %vm285, %v280
        %s290 = scalar_lea.vmem %s204, 12
        %v291 = vld [vmem:[%s290] sm:$0xf]
        %v292 = vld [vmem:[%s290 + $0x10] sm:$0xf]
        %v293 = vld [vmem:[%s290 + $0x20] sm:$0xf]
        %v294 = vld [vmem:[%s290 + $0x30] sm:$0xf]
        %v295 = vpack.c.bf16 %v291, %v291
        %v296 = vpack.c.bf16 %v292, %v292
        %v297 = vpack.c.bf16 %v293, %v293
        %v298 = vpack.c.bf16 %v294, %v294
        %303 = vrot.lane.b32.xlu0 %v295, 12
        %v304 = vpop.permute.xlu0 %303
        %305 = vrot.lane.b32.xlu0 %v296, 12
        %v306 = vpop.permute.xlu0 %305
        %307 = vrot.lane.b32.xlu0 %v297, 12
        %v308 = vpop.permute.xlu0 %307
        %309 = vrot.lane.b32.xlu0 %v298, 12
        %v310 = vpop.permute.xlu0 %309
        %vm315 = vcmask 124000
        %316 = vst.msk [vmem:[#allocation2] sm:$0x3] %vm315, %v304
        %317 = vst.msk [vmem:[#allocation2 + $0x8] sm:$0x3] %vm315, %v306
        %318 = vst.msk [vmem:[#allocation2 + $0x10] sm:$0x3] %vm315, %v308
        %319 = vst.msk [vmem:[#allocation2 + $0x18] sm:$0x3] %vm315, %v310
        %s320 = scalar_lea.vmem %s204, 64
        %v321 = vld [vmem:[%s320] sm:$0xf]
        %v322 = vld [vmem:[%s320 + $0x10] sm:$0xf]
        %v323 = vld [vmem:[%s320 + $0x20] sm:$0xf]
        %v324 = vld [vmem:[%s320 + $0x30] sm:$0xf]
        %v325 = vpack.c.bf16 %v321, %v321
        %v326 = vpack.c.bf16 %v322, %v322
        %v327 = vpack.c.bf16 %v323, %v323
        %v328 = vpack.c.bf16 %v324, %v324
        %333 = vrot.lane.b32.xlu0 %v325, 16
        %v334 = vpop.permute.xlu0 %333
        %335 = vrot.lane.b32.xlu0 %v326, 16
        %v336 = vpop.permute.xlu0 %335
        %337 = vrot.lane.b32.xlu0 %v327, 16
        %v338 = vpop.permute.xlu0 %337
        %339 = vrot.lane.b32.xlu0 %v328, 16
        %v340 = vpop.permute.xlu0 %339
        %vm345 = vcmask 156800
        %346 = vst.msk [vmem:[#allocation2] sm:$0x3] %vm345, %v334
        %347 = vst.msk [vmem:[#allocation2 + $0x8] sm:$0x3] %vm345, %v336
        %348 = vst.msk [vmem:[#allocation2 + $0x10] sm:$0x3] %vm345, %v338
        %349 = vst.msk [vmem:[#allocation2 + $0x18] sm:$0x3] %vm345, %v340
        %s350 = scalar_lea.vmem %s204, 68
        %v351 = vld [vmem:[%s350] sm:$0xf]
        %v352 = vld [vmem:[%s350 + $0x10] sm:$0xf]
        %v353 = vld [vmem:[%s350 + $0x20] sm:$0xf]
        %v354 = vld [vmem:[%s350 + $0x30] sm:$0xf]
        %v355 = vpack.c.bf16 %v351, %v351
        %v356 = vpack.c.bf16 %v352, %v352
        %v357 = vpack.c.bf16 %v353, %v353
        %v358 = vpack.c.bf16 %v354, %v354
        %363 = vrot.lane.b32.xlu0 %v355, 20
        %v364 = vpop.permute.xlu0 %363
        %365 = vrot.lane.b32.xlu0 %v356, 20
        %v366 = vpop.permute.xlu0 %365
        %367 = vrot.lane.b32.xlu0 %v357, 20
        %v368 = vpop.permute.xlu0 %367
        %369 = vrot.lane.b32.xlu0 %v358, 20
        %v370 = vpop.permute.xlu0 %369
        %vm375 = vcmask 189600
        %376 = vst.msk [vmem:[#allocation2] sm:$0x3] %vm375, %v364
        %377 = vst.msk [vmem:[#allocation2 + $0x8] sm:$0x3] %vm375, %v366
        %378 = vst.msk [vmem:[#allocation2 + $0x10] sm:$0x3] %vm375, %v368
        %379 = vst.msk [vmem:[#allocation2 + $0x18] sm:$0x3] %vm375, %v370
        %s380 = scalar_lea.vmem %s204, 72
        %v381 = vld [vmem:[%s380] sm:$0xf]
        %v382 = vld [vmem:[%s380 + $0x10] sm:$0xf]
        %v383 = vld [vmem:[%s380 + $0x20] sm:$0xf]
        %v384 = vld [vmem:[%s380 + $0x30] sm:$0xf]
        %v385 = vpack.c.bf16 %v381, %v381
        %v386 = vpack.c.bf16 %v382, %v382
        %v387 = vpack.c.bf16 %v383, %v383
        %v388 = vpack.c.bf16 %v384, %v384
        %393 = vrot.lane.b32.xlu0 %v385, 24
        %v394 = vpop.permute.xlu0 %393
        %395 = vrot.lane.b32.xlu0 %v386, 24
        %v396 = vpop.permute.xlu0 %395
        %397 = vrot.lane.b32.xlu0 %v387, 24
        %v398 = vpop.permute.xlu0 %397
        %399 = vrot.lane.b32.xlu0 %v388, 24
        %v400 = vpop.permute.xlu0 %399
        %vm405 = vcmask 222400
        %406 = vst.msk [vmem:[#allocation2] sm:$0x3] %vm405, %v394
        %407 = vst.msk [vmem:[#allocation2 + $0x8] sm:$0x3] %vm405, %v396
        %408 = vst.msk [vmem:[#allocation2 + $0x10] sm:$0x3] %vm405, %v398
        %409 = vst.msk [vmem:[#allocation2 + $0x18] sm:$0x3] %vm405, %v400
        %s410 = scalar_lea.vmem %s204, 76
        %v411 = vld [vmem:[%s410] sm:$0xf]
        %v412 = vld [vmem:[%s410 + $0x10] sm:$0xf]
        %v413 = vld [vmem:[%s410 + $0x20] sm:$0xf]
        %v414 = vld [vmem:[%s410 + $0x30] sm:$0xf]
        %v415 = vpack.c.bf16 %v411, %v411
        %v416 = vpack.c.bf16 %v412, %v412
        %v417 = vpack.c.bf16 %v413, %v413
        %v418 = vpack.c.bf16 %v414, %v414
        %423 = vrot.lane.b32.xlu0 %v415, 28
        %v424 = vpop.permute.xlu0 %423
        %425 = vrot.lane.b32.xlu0 %v416, 28
        %v426 = vpop.permute.xlu0 %425
        %427 = vrot.lane.b32.xlu0 %v417, 28
        %v428 = vpop.permute.xlu0 %427
        %429 = vrot.lane.b32.xlu0 %v418, 28
        %v430 = vpop.permute.xlu0 %429
        %vm435 = vcmask 255200
        %436 = vst.msk [vmem:[#allocation2] sm:$0x3] %vm435, %v424
        %437 = vst.msk [vmem:[#allocation2 + $0x8] sm:$0x3] %vm435, %v426
        %438 = vst.msk [vmem:[#allocation2 + $0x10] sm:$0x3] %vm435, %v428
        %439 = vst.msk [vmem:[#allocation2 + $0x18] sm:$0x3] %vm435, %v430
        %s440 = scalar_lea.vmem %s204, 128
        %v441 = vld [vmem:[%s440] sm:$0xf]
        %v442 = vld [vmem:[%s440 + $0x10] sm:$0xf]
        %v443 = vld [vmem:[%s440 + $0x20] sm:$0xf]
        %v444 = vld [vmem:[%s440 + $0x30] sm:$0xf]
        %v445 = vpack.c.bf16 %v441, %v441
        %v446 = vpack.c.bf16 %v442, %v442
        %v447 = vpack.c.bf16 %v443, %v443
        %v448 = vpack.c.bf16 %v444, %v444
        %453 = vrot.lane.b32.xlu0 %v445, 32
        %v454 = vpop.permute.xlu0 %453
        %455 = vrot.lane.b32.xlu0 %v446, 32
        %v456 = vpop.permute.xlu0 %455
        %457 = vrot.lane.b32.xlu0 %v447, 32
        %v458 = vpop.permute.xlu0 %457
        %459 = vrot.lane.b32.xlu0 %v448, 32
        %v460 = vpop.permute.xlu0 %459
        %vm465 = vcmask 288000
        %466 = vst.msk [vmem:[#allocation2] sm:$0x3] %vm465, %v454
        %467 = vst.msk [vmem:[#allocation2 + $0x8] sm:$0x3] %vm465, %v456
        %468 = vst.msk [vmem:[#allocation2 + $0x10] sm:$0x3] %vm465, %v458
        %469 = vst.msk [vmem:[#allocation2 + $0x18] sm:$0x3] %vm465, %v460
        %s470 = scalar_lea.vmem %s204, 132
        %v471 = vld [vmem:[%s470] sm:$0xf]
        %v472 = vld [vmem:[%s470 + $0x10] sm:$0xf]
        %v473 = vld [vmem:[%s470 + $0x20] sm:$0xf]
        %v474 = vld [vmem:[%s470 + $0x30] sm:$0xf]
        %v475 = vpack.c.bf16 %v471, %v471
        %v476 = vpack.c.bf16 %v472, %v472
        %v477 = vpack.c.bf16 %v473, %v473
        %v478 = vpack.c.bf16 %v474, %v474
        %483 = vrot.lane.b32.xlu0 %v475, 36
        %v484 = vpop.permute.xlu0 %483
        %485 = vrot.lane.b32.xlu0 %v476, 36
        %v486 = vpop.permute.xlu0 %485
        %487 = vrot.lane.b32.xlu0 %v477, 36
        %v488 = vpop.permute.xlu0 %487
        %489 = vrot.lane.b32.xlu0 %v478, 36
        %v490 = vpop.permute.xlu0 %489
        %vm495 = vcmask 320800
        %496 = vst.msk [vmem:[#allocation2] sm:$0x3] %vm495, %v484
        %497 = vst.msk [vmem:[#allocation2 + $0x8] sm:$0x3] %vm495, %v486
        %498 = vst.msk [vmem:[#allocation2 + $0x10] sm:$0x3] %vm495, %v488
        %499 = vst.msk [vmem:[#allocation2 + $0x18] sm:$0x3] %vm495, %v490
        %s500 = scalar_lea.vmem %s204, 136
        %v501 = vld [vmem:[%s500] sm:$0xf]
        %v502 = vld [vmem:[%s500 + $0x10] sm:$0xf]
        %v503 = vld [vmem:[%s500 + $0x20] sm:$0xf]
        %v504 = vld [vmem:[%s500 + $0x30] sm:$0xf]
        %v505 = vpack.c.bf16 %v501, %v501
        %v506 = vpack.c.bf16 %v502, %v502
        %v507 = vpack.c.bf16 %v503, %v503
        %v508 = vpack.c.bf16 %v504, %v504
        %513 = vrot.lane.b32.xlu0 %v505, 40
        %v514 = vpop.permute.xlu0 %513
        %515 = vrot.lane.b32.xlu0 %v506, 40
        %v516 = vpop.permute.xlu0 %515
        %517 = vrot.lane.b32.xlu0 %v507, 40
        %v518 = vpop.permute.xlu0 %517
        %519 = vrot.lane.b32.xlu0 %v508, 40
        %v520 = vpop.permute.xlu0 %519
        %vm525 = vcmask 353600
        %526 = vst.msk [vmem:[#allocation2] sm:$0x3] %vm525, %v514
        %527 = vst.msk [vmem:[#allocation2 + $0x8] sm:$0x3] %vm525, %v516
        %528 = vst.msk [vmem:[#allocation2 + $0x10] sm:$0x3] %vm525, %v518
        %529 = vst.msk [vmem:[#allocation2 + $0x18] sm:$0x3] %vm525, %v520
        %s530 = scalar_lea.vmem %s204, 140
        %v531 = vld [vmem:[%s530] sm:$0xf]
        %v532 = vld [vmem:[%s530 + $0x10] sm:$0xf]
        %v533 = vld [vmem:[%s530 + $0x20] sm:$0xf]
        %v534 = vld [vmem:[%s530 + $0x30] sm:$0xf]
        %v535 = vpack.c.bf16 %v531, %v531
        %v536 = vpack.c.bf16 %v532, %v532
        %v537 = vpack.c.bf16 %v533, %v533
        %v538 = vpack.c.bf16 %v534, %v534
        %543 = vrot.lane.b32.xlu0 %v535, 44
        %v544 = vpop.permute.xlu0 %543
        %545 = vrot.lane.b32.xlu0 %v536, 44
        %v546 = vpop.permute.xlu0 %545
        %547 = vrot.lane.b32.xlu0 %v537, 44
        %v548 = vpop.permute.xlu0 %547
        %549 = vrot.lane.b32.xlu0 %v538, 44
        %v550 = vpop.permute.xlu0 %549
        %vm555 = vcmask 386400
        %556 = vst.msk [vmem:[#allocation2] sm:$0x3] %vm555, %v544
        %557 = vst.msk [vmem:[#allocation2 + $0x8] sm:$0x3] %vm555, %v546
        %558 = vst.msk [vmem:[#allocation2 + $0x10] sm:$0x3] %vm555, %v548
        %559 = vst.msk [vmem:[#allocation2 + $0x18] sm:$0x3] %vm555, %v550
        %s560 = scalar_lea.vmem %s204, 192
        %v561 = vld [vmem:[%s560] sm:$0xf]
        %v562 = vld [vmem:[%s560 + $0x10] sm:$0xf]
        %v563 = vld [vmem:[%s560 + $0x20] sm:$0xf]
        %v564 = vld [vmem:[%s560 + $0x30] sm:$0xf]
        %v565 = vpack.c.bf16 %v561, %v561
        %v566 = vpack.c.bf16 %v562, %v562
        %v567 = vpack.c.bf16 %v563, %v563
        %v568 = vpack.c.bf16 %v564, %v564
        %573 = vrot.lane.b32.xlu0 %v565, 48
        %v574 = vpop.permute.xlu0 %573
        %575 = vrot.lane.b32.xlu0 %v566, 48
        %v576 = vpop.permute.xlu0 %575
        %577 = vrot.lane.b32.xlu0 %v567, 48
        %v578 = vpop.permute.xlu0 %577
        %579 = vrot.lane.b32.xlu0 %v568, 48
        %v580 = vpop.permute.xlu0 %579
        %vm585 = vcmask 419200
        %586 = vst.msk [vmem:[#allocation2] sm:$0x3] %vm585, %v574
        %587 = vst.msk [vmem:[#allocation2 + $0x8] sm:$0x3] %vm585, %v576
        %588 = vst.msk [vmem:[#allocation2 + $0x10] sm:$0x3] %vm585, %v578
        %589 = vst.msk [vmem:[#allocation2 + $0x18] sm:$0x3] %vm585, %v580
        %s590 = scalar_lea.vmem %s204, 196
        %v591 = vld [vmem:[%s590] sm:$0xf]
        %v592 = vld [vmem:[%s590 + $0x10] sm:$0xf]
        %v593 = vld [vmem:[%s590 + $0x20] sm:$0xf]
        %v594 = vld [vmem:[%s590 + $0x30] sm:$0xf]
        %v595 = vpack.c.bf16 %v591, %v591
        %v596 = vpack.c.bf16 %v592, %v592
        %v597 = vpack.c.bf16 %v593, %v593
        %v598 = vpack.c.bf16 %v594, %v594
        %603 = vrot.lane.b32.xlu0 %v595, 52
        %v604 = vpop.permute.xlu0 %603
        %605 = vrot.lane.b32.xlu0 %v596, 52
        %v606 = vpop.permute.xlu0 %605
        %607 = vrot.lane.b32.xlu0 %v597, 52
        %v608 = vpop.permute.xlu0 %607
        %609 = vrot.lane.b32.xlu0 %v598, 52
        %v610 = vpop.permute.xlu0 %609
        %vm615 = vcmask 452000
        %616 = vst.msk [vmem:[#allocation2] sm:$0x3] %vm615, %v604
        %617 = vst.msk [vmem:[#allocation2 + $0x8] sm:$0x3] %vm615, %v606
        %618 = vst.msk [vmem:[#allocation2 + $0x10] sm:$0x3] %vm615, %v608
        %619 = vst.msk [vmem:[#allocation2 + $0x18] sm:$0x3] %vm615, %v610
        %s620 = scalar_lea.vmem %s204, 200
        %v621 = vld [vmem:[%s620] sm:$0xf]
        %v622 = vld [vmem:[%s620 + $0x10] sm:$0xf]
        %v623 = vld [vmem:[%s620 + $0x20] sm:$0xf]
        %v624 = vld [vmem:[%s620 + $0x30] sm:$0xf]
        %v625 = vpack.c.bf16 %v621, %v621
        %v626 = vpack.c.bf16 %v622, %v622
        %v627 = vpack.c.bf16 %v623, %v623
        %v628 = vpack.c.bf16 %v624, %v624
        %633 = vrot.lane.b32.xlu0 %v625, 56
        %v634 = vpop.permute.xlu0 %633
        %635 = vrot.lane.b32.xlu0 %v626, 56
        %v636 = vpop.permute.xlu0 %635
        %637 = vrot.lane.b32.xlu0 %v627, 56
        %v638 = vpop.permute.xlu0 %637
        %639 = vrot.lane.b32.xlu0 %v628, 56
        %v640 = vpop.permute.xlu0 %639
        %vm645 = vcmask 484800
        %646 = vst.msk [vmem:[#allocation2] sm:$0x3] %vm645, %v634
        %647 = vst.msk [vmem:[#allocation2 + $0x8] sm:$0x3] %vm645, %v636
        %648 = vst.msk [vmem:[#allocation2 + $0x10] sm:$0x3] %vm645, %v638
        %649 = vst.msk [vmem:[#allocation2 + $0x18] sm:$0x3] %vm645, %v640
        %s650 = scalar_lea.vmem %s204, 204
        %v651 = vld [vmem:[%s650] sm:$0xf]
        %v652 = vld [vmem:[%s650 + $0x10] sm:$0xf]
        %v653 = vld [vmem:[%s650 + $0x20] sm:$0xf]
        %v654 = vld [vmem:[%s650 + $0x30] sm:$0xf]
        %v655 = vpack.c.bf16 %v651, %v651
        %v656 = vpack.c.bf16 %v652, %v652
        %v657 = vpack.c.bf16 %v653, %v653
        %v658 = vpack.c.bf16 %v654, %v654
        %663 = vrot.lane.b32.xlu0 %v655, 60
        %v664 = vpop.permute.xlu0 %663
        %665 = vrot.lane.b32.xlu0 %v656, 60
        %v666 = vpop.permute.xlu0 %665
        %667 = vrot.lane.b32.xlu0 %v657, 60
        %v668 = vpop.permute.xlu0 %667
        %669 = vrot.lane.b32.xlu0 %v658, 60
        %v670 = vpop.permute.xlu0 %669
        %vm675 = vcmask 517600
        %676 = vst.msk [vmem:[#allocation2] sm:$0x3] %vm675, %v664
        %677 = vst.msk [vmem:[#allocation2 + $0x8] sm:$0x3] %vm675, %v666
        %678 = vst.msk [vmem:[#allocation2 + $0x10] sm:$0x3] %vm675, %v668
        %679 = vst.msk [vmem:[#allocation2 + $0x18] sm:$0x3] %vm675, %v670
        %v680 = vld [vmem:[#allocation2] sm:$0xf]
        %v681 = vld [vmem:[#allocation2 + $0x4] sm:$0xf]
        %v682 = vld [vmem:[#allocation2 + $0x8] sm:$0xf]
        %v683 = vld [vmem:[#allocation2 + $0xc] sm:$0xf]
        %v684 = vld [vmem:[#allocation2 + $0x10] sm:$0xf]
        %v685 = vld [vmem:[#allocation2 + $0x14] sm:$0xf]
        %v686 = vld [vmem:[#allocation2 + $0x18] sm:$0xf]
        %v687 = vld [vmem:[#allocation2 + $0x1c] sm:$0xf]
        %v688 = vld [vmem:[%s1] sm:$0xf]
        %v689 = vld [vmem:[%s1 + $0x4] sm:$0xf]
        %v690 = vld [vmem:[%s1 + $0x8] sm:$0xf]
        %v691 = vld [vmem:[%s1 + $0xc] sm:$0xf]
        %v692 = vld [vmem:[%s1 + $0x10] sm:$0xf]
        %v693 = vld [vmem:[%s1 + $0x14] sm:$0xf]
        %v694 = vld [vmem:[%s1 + $0x18] sm:$0xf]
        %v695 = vld [vmem:[%s1 + $0x1c] sm:$0xf]
        %v696 = vld [vmem:[%s1 + $0x20] sm:$0xf]
        %v697 = vld [vmem:[%s1 + $0x24] sm:$0xf]
        %v698 = vld [vmem:[%s1 + $0x28] sm:$0xf]
        %v699 = vld [vmem:[%s1 + $0x2c] sm:$0xf]
        %v700 = vld [vmem:[%s1 + $0x30] sm:$0xf]
        %v701 = vld [vmem:[%s1 + $0x34] sm:$0xf]
        %v702 = vld [vmem:[%s1 + $0x38] sm:$0xf]
        %v703 = vld [vmem:[%s1 + $0x3c] sm:$0xf]
        %v704 = vld [vmem:[%s2] sm:$0x1]
        %v706 = vperm.slane %v704, 0
        %v716 = vunpack.c.l.b16 %v680
        %v717 = vunpack.c.l.b16 %v681
        %v718 = vunpack.c.l.b16 %v682
        %v719 = vunpack.c.l.b16 %v683
        %v720 = vunpack.c.l.b16 %v684
        %v721 = vunpack.c.l.b16 %v685
        %v722 = vunpack.c.l.b16 %v686
        %v723 = vunpack.c.l.b16 %v687
        %v724 = vpack.c.b16 %v717, %v716
        %v725 = vpack.c.b16 %v719, %v718
        %v726 = vpack.c.b16 %v721, %v720
        %v727 = vpack.c.b16 %v723, %v722
        %v748 = vunpack.c.l.b16 %v688
        %v749 = vunpack.c.l.b16 %v689
        %v750 = vunpack.c.l.b16 %v690
        %v751 = vunpack.c.l.b16 %v691
        %v752 = vunpack.c.l.b16 %v692
        %v753 = vunpack.c.l.b16 %v693
        %v754 = vunpack.c.l.b16 %v694
        %v755 = vunpack.c.l.b16 %v695
        %v756 = vunpack.c.l.b16 %v696
        %v757 = vunpack.c.l.b16 %v697
        %v758 = vunpack.c.l.b16 %v698
        %v759 = vunpack.c.l.b16 %v699
        %v760 = vunpack.c.l.b16 %v700
        %v761 = vunpack.c.l.b16 %v701
        %v762 = vunpack.c.l.b16 %v702
        %v763 = vunpack.c.l.b16 %v703
        %v764 = vpack.c.b16 %v749, %v748
        %v765 = vpack.c.b16 %v751, %v750
        %v766 = vpack.c.b16 %v753, %v752
        %v767 = vpack.c.b16 %v755, %v754
        %v768 = vpack.c.b16 %v757, %v756
        %v769 = vpack.c.b16 %v759, %v758
        %v770 = vpack.c.b16 %v761, %v760
        %v771 = vpack.c.b16 %v763, %v762
        %780 = vmatpush.bf16.msra.mxu0 %v771
        %781 = vmatpush.bf16.msra.mxu0 %v770
        %782 = vmatpush.bf16.msra.mxu0 %v769
        %783 = vmatpush.bf16.msra.mxu0 %v768
        %784 = vmatpush.bf16.msra.mxu0 %v767
        %785 = vmatpush.bf16.msra.mxu0 %v766
        %786 = vmatpush.bf16.msra.mxu0 %v765
        %787 = vmatpush.bf16.msra.mxu0 %v764
        %788 = vmatmul.bf16.gmra.mxu0 %v724
        %v789 = vpop.f32.mrf.mxu0
        %v790 = vadd.f32 %v706, %v789
        %v791 = vpop.f32.mrf.mxu0
        %792 = vmatmul.bf16.gmra.mxu0 %v725
        %v793 = vpop.f32.mrf.mxu0
        %v794 = vadd.f32 %v706, %v793
        %v795 = vpop.f32.mrf.mxu0
        %796 = vmatmul.bf16.gmra.mxu0 %v726
        %v797 = vpop.f32.mrf.mxu0
        %v798 = vadd.f32 %v706, %v797
        %v799 = vpop.f32.mrf.mxu0
        %800 = vmatmul.bf16.gmra.mxu0 %v727
        %v801 = vpop.f32.mrf.mxu0
        %v802 = vadd.f32 %v706, %v801
        %v803 = vpop.f32.mrf.mxu0
        %804 = vdwg.mxu0
        %v805 = vpack.c.bf16 %v790, %v790
        %v806 = vpack.c.bf16 %v794, %v794
        %v807 = vpack.c.bf16 %v798, %v798
        %v808 = vpack.c.bf16 %v802, %v802
        %809 = vst [vmem:[%s193] sm:$0x3] %v805
        %810 = vst [vmem:[%s193 + $0x2] sm:$0x3] %v806
        %811 = vst [vmem:[%s193 + $0x4] sm:$0x3] %v807
        %812 = vst [vmem:[%s193 + $0x6] sm:$0x3] %v808
        %s813 = sand.u32 %s109, 1
        %s814 = scalar_lea.sflag [#allocation4], %s813
        %s815 = sand.u32 %s109, 1
        %s816 = smul.addr %s815, 8
        %s817 = scalar_lea.vmem [#allocation3], %s816
        // Predicated region
        $region33: #{patch_embed.1} parent=31 // pred_check
          %p818 = pneg %p119
        $region34: #{patch_embed.1} parent=31 // pred_check_branch
          %820 = sbr.rel (%p818) target = $region36
        $region35: #{patch_embed.1} parent=31 // pred_region
          %s821 = smul.u32 4, %s22
          %823 = vsyncadd %s814, 0
          %s824 = smul.addr %s21, 4
          %s825 = sadd.s32 %s821, %s824
          %s826 = smul.addr %s825, 2
          %s827 = scalar_lea.hbm %s3, %s826
          %s828 = sshll.u32 %s817, 4
          %s829 = int_to_ptr.vmem [resolvable:$true] %s828
          %s830 = sshll.u32 %s827, 4
          %s831 = int_to_ptr.hbm [resolvable:$true] %s830
          %836 = dma.vmem_to_hbm [thread:$0]  %s829, 128, %s831, %s814, 32, 32, 2
        $region36: #{patch_embed.1} parent=31 // pred_fallthru
          _
      $region32: #{patch_embed.1} parent=5 // pred_fallthru
        _
      %p837 = scmp.le.s32.totalorder 2, %s12
      // Predicated region
      $region37: #{patch_embed.1} parent=5 // pred_check
        %p838 = pneg %p837
      $region38: #{patch_embed.1} parent=5 // pred_check_branch
        %840 = sbr.rel (%p838) target = $region40
      $region39: #{patch_embed.1} parent=5 // pred_region
        %s841 = ssub.s32 %s12, 2
        // Predicated region
        $region41: #{patch_embed.1} parent=39 // pred_check
          %p842 = pneg %p125
        $region42: #{patch_embed.1} parent=39 // pred_check_branch
          %844 = sbr.rel (%p842) target = $region44
        $region43: #{patch_embed.1} parent=39 // pred_region
          %s845 = sand.u32 %s110, 1
          %s846 = scalar_lea.sflag [#allocation4], %s845
          %s847 = sand.u32 %s110, 1
          %s848 = smul.addr %s847, 8
          %s849 = scalar_lea.vmem [#allocation3], %s848
          %851 = dma.done %s846, 128
        $region44: #{patch_embed.1} parent=39 // pred_fallthru
          _
      $region40: #{patch_embed.1} parent=5 // pred_fallthru
        _
    $region6: #{patch_embed.1} parent=1 // loop_footer
      %s16 = sadd.s32 1, %s12
    $region7: #{patch_embed.1} parent=1 // loop_footer_branch
      %11 = sbr.rel target = $region3
    $region8: #{patch_embed.1} parent=1 // loop_exit
      _
    %852 = vsyncpa [#allocation4], 1
    %s853 = scalar_lea.sflag [#allocation4], 1
    %854 = vsyncpa %s853, 1

</llo_original>
